<compile_context>
chip_gen: v7x
topology: tpu7x:2x2x1
jax: 0.10.0
libtpu: 0.0.40
codegen_flags: <defaults>
</compile_context>

<pallas_src>
import jax
import jax.numpy as jnp
from jax.experimental import pallas as pl
from jax.experimental.pallas import tpu as pltpu


_LANE = 128                              # vreg lane count (fast axis)
_TARGET_BLOCK_BYTES = 4 * 1024 * 1024    # ~4 MiB/block: good on v5e/v6e/v7x
_VMEM_LIMIT_BYTES = 40 * 1024 * 1024     # explicit: > v5e's 16 MiB default, < v7x's 64 MiB


# ----------------------------------------------------------------------------
# Pallas kernel
# ----------------------------------------------------------------------------

def _corr2softmax_kernel(wb_ref, x_ref, o_ref):
    """o = w * x + b; (w, b) are f32 scalars in SMEM; compute f32, cast on store."""
    w = wb_ref[0]
    b = wb_ref[1]
    x = x_ref[...].astype(jnp.float32)
    o_ref[...] = (x * w + b).astype(o_ref.dtype)


# ----------------------------------------------------------------------------
# Wrapper
# ----------------------------------------------------------------------------

def _packed_sublanes(dtype):
    """Sublane packing factor: 8 for 32-bit, 16 for 16-bit, 32 for 8-bit dtypes."""
    itemsize = jnp.dtype(dtype).itemsize
    return max(8, 32 // itemsize)


def _pick_tile_rows(m, packed, itemsize):
    """~_TARGET_BLOCK_BYTES per block, a multiple of `packed`, and small enough
    that the grid has >= 2 steps whenever m allows (v7x has 2 TensorCores)."""
    target = max(packed, (_TARGET_BLOCK_BYTES // (_LANE * itemsize)) // packed * packed)
    half = max(packed, (m // 2) // packed * packed)
    return min(target, half)


def _run(x2, wb, tm, alias_input):
    m = x2.shape[0]
    kwargs = {}
    if alias_input:
        # Output aliases the (single-use) padded temporary input buffer.
        kwargs["input_output_aliases"] = {1: 0}
    return pl.pallas_call(
        _corr2softmax_kernel,
        out_shape=jax.ShapeDtypeStruct((m, _LANE), x2.dtype),
        grid=(pl.cdiv(m, tm),),                       # partial last block is masked
        in_specs=[
            pl.BlockSpec(memory_space=pltpu.MemorySpace.SMEM),  # (w, b) f32 scalars
            pl.BlockSpec((tm, _LANE), lambda i: (i, 0)),        # x tile
        ],
        out_specs=pl.BlockSpec((tm, _LANE), lambda i: (i, 0)),
        compiler_params=pltpu.CompilerParams(
            dimension_semantics=("parallel",),
            vmem_limit_bytes=_VMEM_LIMIT_BYTES),
        **kwargs,
    )(wb, x2)


def corr2softmax(x, weight, bias):
    """Pallas implementation of Corr2Softmax.forward: softmax_w * x + softmax_b."""
    orig_shape = x.shape
    dtype = x.dtype
    itemsize = jnp.dtype(dtype).itemsize
    packed = _packed_sublanes(dtype)
    chunk = packed * _LANE
    n = x.size

    # Parameters stay f32 (PyTorch nn.Parameter numerics); kernel casts on store.
    wb = jnp.stack([jnp.asarray(weight, jnp.float32).reshape(()),
                    jnp.asarray(bias, jnp.float32).reshape(())])

    if n % chunk == 0:
        # Fast path (power-of-two correlation maps): reshape in / reshape out
        # are bitcasts -> exactly one HBM read + one HBM write of x.
        x2 = x.reshape(-1, _LANE)
        tm = _pick_tile_rows(x2.shape[0], packed, itemsize)
        out2 = _run(x2, wb, tm, alias_input=False)
        return out2.reshape(orig_shape)

    # Ragged fallback: pad the flat view to a full (packed, 128) chunk, run,
    # slice back.  TODO(synk): a fully fused ragged tail (no pad / no slice
    # pass) would need a manual-DMA 1-D path; not worth it for this module.
    n_pad = pl.cdiv(n, chunk) * chunk
    flat = jnp.pad(x.reshape(-1), (0, n_pad - n))
    x2 = flat.reshape(-1, _LANE)
    tm = _pick_tile_rows(x2.shape[0], packed, itemsize)
    out2 = _run(x2, wb, tm, alias_input=True)
    return out2.reshape(-1)[:n].reshape(orig_shape)


# ----------------------------------------------------------------------------
# Driver
# ----------------------------------------------------------------------------

if __name__ == "__main__":
    key = jax.random.PRNGKey(0)
    k1, k2, k3 = jax.random.split(key, 3)

    fwd = jax.jit(corr2softmax)

    # Main case: NCHW correlation map (fast path, 2-step grid).
    B, C, H, W = 2, 4, 16, 16
    x = jax.random.normal(k1, (B, C, H, W), jnp.float32)
    weight, bias = 200.0, 0.0   # DiSCO-style Corr2Softmax init values
    out = jax.block_until_ready(fwd(x, weight, bias))
    ref = weight * x + bias
    assert out.shape == x.shape and out.dtype == x.dtype
    assert bool(jnp.all(jnp.isfinite(out)))
    assert bool(jnp.allclose(out, ref, rtol=1e-6, atol=1e-6))

    # Ragged size: exercises the pad / slice fallback (with input aliasing).
    x_odd = jax.random.normal(k2, (2, 3, 7, 5), jnp.float32)
    out_odd = jax.block_until_ready(fwd(x_odd, 1.5, -0.25))
    assert bool(jnp.allclose(out_odd, 1.5 * x_odd - 0.25, rtol=1e-6, atol=1e-6))

    # bf16 input: parameters stay f32, compute in f32, cast on store.
    x_bf = jax.random.normal(k3, (B, C, H, W), jnp.bfloat16)
    out_bf = jax.block_until_ready(fwd(x_bf, weight, bias))
    ref_bf = (weight * x_bf.astype(jnp.float32) + bias).astype(jnp.bfloat16)
    assert out_bf.dtype == jnp.bfloat16
    assert bool(jnp.allclose(out_bf.astype(jnp.float32), ref_bf.astype(jnp.float32),
                             rtol=1e-2, atol=1e-2))

    print("KERNEL_OK")
</pallas_src>

<mosaic_0001>
module attributes {stable_mosaic.version = 11 : i64} {
  func.func @_corr2softmax_kernel(%arg0: i32, %arg1: memref<2xf32, #tpu.memory_space<smem>>, %arg2: memref<8x128xf32, #tpu.memory_space<vmem>>, %arg3: memref<8x128xf32, #tpu.memory_space<vmem>>) attributes {dimension_semantics = [#tpu.dimension_semantics<parallel>], iteration_bounds = array<i64: 2>, scalar_prefetch = 0 : i64, scratch_operands = 0 : i64, tpu.core_type = #tpu.core_type<tc>, window_params = [{transform_indices = @transform_0, window_bounds = array<i64: 2>}, {transform_indices = @transform_1, window_bounds = array<i64: 8, 128>}, {transform_indices = @transform_2, window_bounds = array<i64: 8, 128>}]} {
    %c0 = arith.constant 0 : index
    %0 = memref.load %arg1[%c0] : memref<2xf32, #tpu.memory_space<smem>>
    %c1 = arith.constant 1 : index
    %1 = memref.load %arg1[%c1] : memref<2xf32, #tpu.memory_space<smem>>
    %c0_0 = arith.constant 0 : index
    %c0_1 = arith.constant 0 : index
    %2 = vector.load %arg2[%c0_0, %c0_1] : memref<8x128xf32, #tpu.memory_space<vmem>>, vector<8x128xf32>
    %3 = vector.broadcast %0 : f32 to vector<8x128xf32>
    %4 = arith.mulf %2, %3 : vector<8x128xf32>
    %5 = vector.broadcast %1 : f32 to vector<8x128xf32>
    %6 = arith.addf %4, %5 : vector<8x128xf32>
    %c0_2 = arith.constant 0 : index
    %c0_3 = arith.constant 0 : index
    %7 = vector.load %arg3[%c0_2, %c0_3] : memref<8x128xf32, #tpu.memory_space<vmem>>, vector<8x128xf32>
    tpu.vector_store %arg3[%c0_2, %c0_3], %6 {strides = array<i32>} : memref<8x128xf32, #tpu.memory_space<vmem>>, vector<8x128xf32>,
    return
  }
  func.func @transform_0(%arg0: i32) -> i32 {
    %c0_i32 = arith.constant 0 : i32
    %c0_i32_0 = arith.constant 0 : i32
    return %c0_i32 : i32
  }
  func.func @transform_1(%arg0: i32) -> (i32, i32) {
    %c0_i32 = arith.constant 0 : i32
    %c0_i32_0 = arith.constant 0 : i32
    return %arg0, %c0_i32 : i32, i32
  }
  func.func @transform_2(%arg0: i32) -> (i32, i32) {
    %c0_i32 = arith.constant 0 : i32
    %c0_i32_0 = arith.constant 0 : i32
    return %arg0, %c0_i32 : i32, i32
  }
}

</mosaic_0001>

<llo_original>
// kernel: corr2softmax.1
$region0: #{corr2softmax.1}
  #allocation0 [shape = 'u32[]', space=smem, size = 0x4, offset = 0x4, fixed_abs, tag = 'smem constant byte address 0x4 - core index']
  #allocation1 [shape = 'u32[144,128]{1,0:T(1,128)}', space=vmem, size = 0x12000, scoped, tag = 'internal scratch']
  %s0 = inlined_call_operand.vmem [shape: f32[2], index: 0, kind: input, shape index: {}]
  %s1 = inlined_call_operand.vmem [shape: f32[16,128], index: 1, kind: input, shape index: {}]
  %s2 = inlined_call_operand.vmem [shape: f32[16,128], index: 2, kind: output, shape index: {}]
  %s3 = sld [smem:[#allocation0]]
  $region45: #{corr2softmax.1} parent=0
    _
  %s5 = ssub.s32 1, %s3
  %s6 = scalar_select 0, %s5, %s3
  $region1: #{corr2softmax.1} parent=0
    #allocation2 [shape = 'u8[512]{0}', space=smem, size = 0x200, scoped, tag = 'input window, operand 0, single buffered']
    #allocation3 [shape = 's32[2]{0}', space=sflag, size = 0x8, scoped, tag = 'scoped memory for corr2softmax.1']
    %7 = vsyncpa [#allocation3], 0
    loop: start=0, step=1, limit=4
    $region2: #{corr2softmax.1} parent=1 // loop_pre_header
      _
    $region3: #{corr2softmax.1} parent=1 // loop_header
      %s9 = sphi 0, %s13
      %p10 = scmp.ge.s32.totalorder %s9, 4
      %s17 = sphi 0, %s17
      %s19 = sphi 0, %s17
      %s20 = sphi 0, %s19
      %s34 = sphi 0, %s20
      %s40 = sphi 0, %s42
      %s43 = sphi 0, %s40
      %s44 = sphi 0, %s43
      %s60 = sphi 0, %s44
      %s66 = sphi 0, %s68
      %s69 = sphi 0, %s66
      %s70 = sphi 0, %s69
      %s86 = sphi 0, %s70
    $region4: #{corr2softmax.1} parent=1 // loop_header_branch
      %12 = sbr.rel (%p10) target = $region8
    $region5: #{corr2softmax.1} parent=1 // loop_body
      %s14 = ssub.s32 %s9, 1
      %s15 = ssub.s32 %s9, 2
      %s16 = sadd.s32 %s9, 1
      %s18 = sadd.s32 %s17, 1
      %p21 = scmp.eq.s32.totalorder %s9, 1
      %p22 = scmp.ne.s32.totalorder %s17, %s19
      %p23 = scmp.eq.s32.totalorder %s9, 0
      %p24 = por %p22, %p23
      %p25 = scmp.ne.s32.totalorder %s17, %s19
      %p26 = scmp.eq.s32.totalorder %s14, 1
      %p27 = por %p25, %p26
      %p28 = scmp.ne.s32.totalorder %s19, %s20
      %p29 = scmp.eq.s32.totalorder %s14, 0
      %p30 = por %p28, %p29
      %p31 = scmp.ne.s32.totalorder %s19, %s20
      %p32 = scmp.eq.s32.totalorder %s15, 1
      %p33 = por %p31, %p32
      %p35 = scmp.ne.s32.totalorder %s20, %s34
      %p36 = scmp.eq.s32.totalorder %s15, 0
      %p37 = por %p35, %p36
      %s38 = ssub.s32 %s9, %s16
      %p39 = scmp.eq.s32.totalorder %s38, 0
      %s41 = sadd.s32 %s40, 1
      %s42 = scalar_select %p39, %s40, %s41
      %p45 = pneg %p39
      %p46 = scmp.eq.s32.totalorder %s9, 1
      %p47 = por %p45, %p46
      %p48 = scmp.ne.s32.totalorder %s40, %s43
      %p49 = scmp.eq.s32.totalorder %s9, 0
      %p50 = por %p48, %p49
      %p51 = scmp.ne.s32.totalorder %s40, %s43
      %p52 = scmp.eq.s32.totalorder %s14, 1
      %p53 = por %p51, %p52
      %p54 = scmp.ne.s32.totalorder %s43, %s44
      %p55 = scmp.eq.s32.totalorder %s14, 0
      %p56 = por %p54, %p55
      %p57 = scmp.ne.s32.totalorder %s43, %s44
      %p58 = scmp.eq.s32.totalorder %s15, 1
      %p59 = por %p57, %p58
      %p61 = scmp.ne.s32.totalorder %s44, %s60
      %p62 = scmp.eq.s32.totalorder %s15, 0
      %p63 = por %p61, %p62
      %s64 = ssub.s32 %s9, %s16
      %p65 = scmp.eq.s32.totalorder %s64, 0
      %s67 = sadd.s32 %s66, 1
      %s68 = scalar_select %p65, %s66, %s67
      %p71 = pneg %p65
      %p72 = scmp.eq.s32.totalorder %s9, 1
      %p73 = por %p71, %p72
      %p74 = scmp.ne.s32.totalorder %s66, %s69
      %p75 = scmp.eq.s32.totalorder %s9, 0
      %p76 = por %p74, %p75
      %p77 = scmp.ne.s32.totalorder %s66, %s69
      %p78 = scmp.eq.s32.totalorder %s14, 1
      %p79 = por %p77, %p78
      %p80 = scmp.ne.s32.totalorder %s69, %s70
      %p81 = scmp.eq.s32.totalorder %s14, 0
      %p82 = por %p80, %p81
      %p83 = scmp.ne.s32.totalorder %s69, %s70
      %p84 = scmp.eq.s32.totalorder %s15, 1
      %p85 = por %p83, %p84
      %p87 = scmp.ne.s32.totalorder %s70, %s86
      %p88 = scmp.eq.s32.totalorder %s15, 0
      %p89 = por %p87, %p88
      %p90 = scmp.le.s32.totalorder 1, %s9
      %p91 = scmp.lt.s32.totalorder %s9, 3
      %p92 = pnand %p90, %p91
      %p93 = pneg %p92
      // Predicated region
      $region9: #{corr2softmax.1} parent=5 // pred_check
        _
      $region10: #{corr2softmax.1} parent=5 // pred_check_branch
        %95 = sbr.rel (%p92) target = $region12
      $region11: #{corr2softmax.1} parent=5 // pred_region
        %s96 = ssub.s32 %s9, 1
        // Predicated region
        $region13: #{corr2softmax.1} parent=11 // pred_check
          %p97 = pneg %p30
        $region14: #{corr2softmax.1} parent=11 // pred_check_branch
          %99 = sbr.rel (%p97) target = $region16
        $region15: #{corr2softmax.1} parent=11 // pred_region
          %s101 = ssub.s32 16, 16
          %102 = vsyncadd [#allocation3], %s101
          %s104 = sshll.u32 %s0, 4
          %s105 = int_to_ptr.vmem [resolvable:$true] %s104
          %107 = dma.vmem_to_smem %s105, 16, [#allocation2], [#allocation3]
        $region16: #{corr2softmax.1} parent=11 // pred_fallthru
          _
      $region12: #{corr2softmax.1} parent=5 // pred_fallthru
        _
      %p108 = scmp.lt.s32.totalorder %s9, 2
      // Predicated region
      $region17: #{corr2softmax.1} parent=5 // pred_check
        %p109 = pneg %p108
      $region18: #{corr2softmax.1} parent=5 // pred_check_branch
        %111 = sbr.rel (%p109) target = $region20
      $region19: #{corr2softmax.1} parent=5 // pred_region
        // Predicated region
        $region21: #{corr2softmax.1} parent=19 // pred_check
          %p112 = pneg %p50
        $region22: #{corr2softmax.1} parent=19 // pred_check_branch
          %114 = sbr.rel (%p112) target = $region24
        $region23: #{corr2softmax.1} parent=19 // pred_region
          %p115 = scmp.lt.s32.totalorder %s9, 1
          %s116 = scalar_select %p115, %s9, 1
          %s117 = smul.addr %s116, 8
          %s118 = scalar_lea.vmem %s1, %s117
        $region24: #{corr2softmax.1} parent=19 // pred_fallthru
          _
      $region20: #{corr2softmax.1} parent=5 // pred_fallthru
        _
      %p119 = scmp.le.s32.totalorder 1, %s9
      %p120 = scmp.lt.s32.totalorder %s9, 3
      %p121 = pnand %p119, %p120
      %p122 = pneg %p121
      // Predicated region
      $region25: #{corr2softmax.1} parent=5 // pred_check
        _
      $region26: #{corr2softmax.1} parent=5 // pred_check_branch
        %124 = sbr.rel (%p121) target = $region28
      $region27: #{corr2softmax.1} parent=5 // pred_region
        %s125 = ssub.s32 %s9, 1
        // Predicated region
        $region29: #{corr2softmax.1} parent=27 // pred_check
          %p126 = pneg %p30
        $region30: #{corr2softmax.1} parent=27 // pred_check_branch
          %128 = sbr.rel (%p126) target = $region32
        $region31: #{corr2softmax.1} parent=27 // pred_region
          %129 = dma.done [#allocation3], 16
        $region32: #{corr2softmax.1} parent=27 // pred_fallthru
          _
        %130 = sfence
        %p131 = pneg %p30
        %p132 = pneg %p27
        %p133 = scmp.lt.s32.totalorder %s14, 1
        %s134 = scalar_select %p133, %s14, 1
        %s135 = smul.addr %s134, 8
        %s136 = scalar_lea.vmem %s1, %s135
        %p137 = pneg %p56
        %p138 = pneg %p53
        %p139 = pneg %p82
        %p140 = pneg %p79
        %p141 = scmp.lt.s32.totalorder %s14, 1
        %s142 = scalar_select %p141, %s14, 1
        %s143 = smul.addr %s142, 8
        %s144 = scalar_lea.vmem %s2, %s143
        %p145 = scmp.lt.s32.totalorder %s14, 1
        %s146 = scalar_select %p145, %s14, 1
        %s147 = smul.addr %s146, 8
        %s148 = scalar_lea.vmem %s1, %s147
        %p149 = scmp.lt.s32.totalorder %s14, 1
        %s150 = scalar_select %p149, %s14, 1
        %s151 = smul.addr %s150, 8
        %s152 = scalar_lea.vmem %s2, %s151
        %s153 = sld [smem:[#allocation2]]
        %s154 = sld [smem:[#allocation2 + $0x1]]
        %v155 = vld [vmem:[%s148] sm:$0xff]
        %v156 = vstv %s153
        %v157 = vmul.f32 %v155, %v156
        %v158 = vstv %s154
        %v159 = vadd.f32 %v157, %v158
        %160 = vst [vmem:[%s152] sm:$0xff] %v159
        %p161 = scmp.lt.s32.totalorder %s14, 1
        %s162 = scalar_select %p161, %s14, 1
        %s163 = smul.addr %s162, 8
        %s164 = scalar_lea.vmem %s2, %s163
        // Predicated region
        $region33: #{corr2softmax.1} parent=27 // pred_check
          %p165 = pneg %p79
        $region34: #{corr2softmax.1} parent=27 // pred_check_branch
          %167 = sbr.rel (%p165) target = $region36
        $region35: #{corr2softmax.1} parent=27 // pred_region
          _
        $region36: #{corr2softmax.1} parent=27 // pred_fallthru
          _
      $region28: #{corr2softmax.1} parent=5 // pred_fallthru
        _
      %p168 = scmp.le.s32.totalorder 2, %s9
      // Predicated region
      $region37: #{corr2softmax.1} parent=5 // pred_check
        %p169 = pneg %p168
      $region38: #{corr2softmax.1} parent=5 // pred_check_branch
        %171 = sbr.rel (%p169) target = $region40
      $region39: #{corr2softmax.1} parent=5 // pred_region
        %s172 = ssub.s32 %s9, 2
        // Predicated region
        $region41: #{corr2softmax.1} parent=39 // pred_check
          %p173 = pneg %p85
        $region42: #{corr2softmax.1} parent=39 // pred_check_branch
          %175 = sbr.rel (%p173) target = $region44
        $region43: #{corr2softmax.1} parent=39 // pred_region
          %p176 = scmp.lt.s32.totalorder %s15, 1
          %s177 = scalar_select %p176, %s15, 1
          %s178 = smul.addr %s177, 8
          %s179 = scalar_lea.vmem %s2, %s178
        $region44: #{corr2softmax.1} parent=39 // pred_fallthru
          _
      $region40: #{corr2softmax.1} parent=5 // pred_fallthru
        _
    $region6: #{corr2softmax.1} parent=1 // loop_footer
      %s13 = sadd.s32 1, %s9
    $region7: #{corr2softmax.1} parent=1 // loop_footer_branch
      %8 = sbr.rel target = $region3
    $region8: #{corr2softmax.1} parent=1 // loop_exit
      _
    %180 = vsyncpa [#allocation3], 1
    %s181 = scalar_lea.sflag [#allocation3], 1
    %182 = vsyncpa %s181, 1

</llo_original>
